<compile_context>
chip_gen: v5e
topology: v5e:2x2
jax: 0.10.0
libtpu: 0.0.40
codegen_flags: <defaults>
</compile_context>

<pallas_src>
import jax
import jax.numpy as jnp
from jax import lax
from jax.experimental import pallas as pl
from jax.experimental.pallas import tpu as pltpu

EPS = 1e-5  # nn.LayerNorm default eps


def cnn_layernorm_kernel(x_ref, w_ref, b_ref, o_ref):
    # x_ref: (Gblk, F, tT) tile.  Normalize over axis=1 (F = n_feats, sublane
    # axis -> the cross-sublane reduce runs on the XLU, which is idle here).
    x = x_ref[...].astype(jnp.float32)
    mean = jnp.mean(x, axis=1, keepdims=True)         # (Gblk, 1, tT)
    xc = x - mean                                     # bind once, reuse
    var = jnp.mean(xc * xc, axis=1, keepdims=True)    # biased var (PyTorch LayerNorm)
    inv = lax.rsqrt(var + EPS)
    # w_ref / b_ref are (1, F, 1) f32; broadcast over rows and lanes for free.
    o_ref[...] = (xc * inv * w_ref[...] + b_ref[...]).astype(o_ref.dtype)


def _pick_tile_t(T, max_tile=1024):
    """Full T when it is moderate (contiguous per-row slab, exempt from the
    128-lane rule); otherwise a multiple of 128 (ragged last block is masked
    on store, each lane column normalizes independently -> still correct)."""
    if T <= max_tile:
        return T
    return max_tile  # multiple of 128


def _pick_gblk(G_total, F, tT, itemsize, target_bytes=2 << 20):
    """Rows of the merged (B*C) axis per step, sized so a step moves
    ~target_bytes of input (bf16 automatically gets 2x the rows)."""
    bytes_per_g = F * tT * itemsize
    gblk = int(max(1, min(G_total, target_bytes // max(1, bytes_per_g))))
    # Prefer >= ~8 steps along the merged "parallel" axis (keeps both v7x
    # TensorCores and the pipeline fed) as long as each step still moves
    # >= ~512 KiB.
    min_step_bytes = 512 << 10
    while gblk > 1 and pl.cdiv(G_total, gblk) < 8 and (gblk // 2) * bytes_per_g >= min_step_bytes:
        gblk //= 2
    return gblk


def cnn_layer_norm(x, weight, bias):
    """x: (B, C, n_feats, T); weight/bias: (n_feats,). Returns same shape/dtype as x."""
    B, C, F, T = x.shape
    G = B * C
    itemsize = jnp.dtype(x.dtype).itemsize

    tT = _pick_tile_t(T)
    nT = pl.cdiv(T, tT)
    Gblk = _pick_gblk(G, F, tT, itemsize)
    nG = pl.cdiv(G, Gblk)

    # Free reshape: merge B and C so one independent axis carries the blocking.
    x3 = x.reshape(G, F, T)

    # Pre-shape params to the broadcast shape the kernel consumes directly.
    w3 = weight.reshape(1, F, 1).astype(jnp.float32)
    b3 = bias.reshape(1, F, 1).astype(jnp.float32)

    # VMEM budget from the actual footprint: 2 pipeline buffers x (in + out
    # block) + resident params + slack, capped well under v7x's 64 MiB.
    blk_bytes = Gblk * F * tT * itemsize
    vmem_limit = 2 * 2 * blk_bytes + 2 * F * 4 + (1 << 20)
    vmem_limit = int(min(48 << 20, max(8 << 20, vmem_limit)))

    # TODO(synk): for production shapes with T < 128 the output lane width is
    # narrow (masked vst); if that case dominates, switch to a (B*C, T, F)
    # layout with F on the lane axis (fuses the transposes the PyTorch module
    # already implies) instead of this in-place layout.

    y3 = pl.pallas_call(
        cnn_layernorm_kernel,
        out_shape=jax.ShapeDtypeStruct((G, F, T), x.dtype),
        grid_spec=pltpu.PrefetchScalarGridSpec(
            num_scalar_prefetch=0,
            grid=(nG, nT),
            in_specs=[
                pl.BlockSpec((Gblk, F, tT), lambda g, t: (g, 0, t)),
                # Constant index_map -> weight/bias stay resident in VMEM.
                pl.BlockSpec((1, F, 1), lambda g, t: (0, 0, 0)),
                pl.BlockSpec((1, F, 1), lambda g, t: (0, 0, 0)),
            ],
            out_specs=pl.BlockSpec((Gblk, F, tT), lambda g, t: (g, 0, t)),
        ),
        compiler_params=pltpu.CompilerParams(
            dimension_semantics=("parallel", "parallel"),
            vmem_limit_bytes=vmem_limit,
        ),
    )(x3, w3, b3)

    return y3.reshape(B, C, F, T)


def _reference(x, weight, bias):
    # Pure-JAX reference mirroring the PyTorch forward exactly.
    xt = jnp.swapaxes(x, 2, 3).astype(jnp.float32)   # (B, C, T, F)
    mean = jnp.mean(xt, axis=-1, keepdims=True)
    var = jnp.mean((xt - mean) ** 2, axis=-1, keepdims=True)
    y = (xt - mean) / jnp.sqrt(var + EPS) * weight + bias
    return jnp.swapaxes(y, 2, 3).astype(x.dtype)     # back to (B, C, F, T)


if __name__ == "__main__":
    key = jax.random.PRNGKey(0)
    B, C, n_feats, T = 2, 4, 16, 16
    x = jax.random.normal(key, (B, C, n_feats, T), dtype=jnp.float32)

    # Parameters per CNNLayerNorm.__init__: LayerNorm(n_feats) with
    # default weight = ones, bias explicitly zero-initialized.
    weight = jnp.ones((n_feats,), dtype=jnp.float32)
    bias = jnp.zeros((n_feats,), dtype=jnp.float32)

    out = cnn_layer_norm(x, weight, bias)
    out = jax.block_until_ready(out)

    ref = _reference(x, weight, bias)
    assert out.shape == (B, C, n_feats, T)
    assert out.dtype == x.dtype
    assert jnp.allclose(out, ref, atol=1e-5, rtol=1e-5), "f32 mismatch vs reference"

    # Secondary check: bf16 input/output (f32 compute path inside the kernel).
    xb = jax.random.normal(jax.random.PRNGKey(1), (1, 2, n_feats, 24),
                           dtype=jnp.float32).astype(jnp.bfloat16)
    outb = jax.block_until_ready(cnn_layer_norm(xb, weight, bias))
    refb = _reference(xb, weight, bias)
    assert outb.dtype == jnp.bfloat16
    assert jnp.allclose(outb.astype(jnp.float32), refb.astype(jnp.float32),
                        atol=2e-2, rtol=2e-2), "bf16 mismatch vs reference"

    print("KERNEL_OK")
</pallas_src>

<mosaic_0001>
module attributes {stable_mosaic.version = 11 : i64} {
  func.func @cnn_layernorm_kernel(%arg0: i32, %arg1: i32, %arg2: memref<8x16x16xf32, #tpu.memory_space<vmem>>, %arg3: memref<1x16x1xf32, #tpu.memory_space<vmem>>, %arg4: memref<1x16x1xf32, #tpu.memory_space<vmem>>, %arg5: memref<8x16x16xf32, #tpu.memory_space<vmem>>) attributes {dimension_semantics = [#tpu.dimension_semantics<parallel>, #tpu.dimension_semantics<parallel>], iteration_bounds = array<i64: 1, 1>, scalar_prefetch = 0 : i64, scratch_operands = 0 : i64, tpu.core_type = #tpu.core_type<tc>, window_params = [{transform_indices = @transform_0, window_bounds = array<i64: 8, 16, 16>}, {pipeline_mode = #tpu.pipeline_mode<synchronous>, transform_indices = @transform_1, window_bounds = array<i64: 1, 16, 1>}, {pipeline_mode = #tpu.pipeline_mode<synchronous>, transform_indices = @transform_2, window_bounds = array<i64: 1, 16, 1>}, {transform_indices = @transform_3, window_bounds = array<i64: 8, 16, 16>}]} {
    %c0 = arith.constant 0 : index
    %c0_0 = arith.constant 0 : index
    %c0_1 = arith.constant 0 : index
    %0 = vector.load %arg2[%c0, %c0_0, %c0_1] : memref<8x16x16xf32, #tpu.memory_space<vmem>>, vector<8x16x16xf32>
    %cst = arith.constant dense<0.000000e+00> : vector<8x16xf32>
    %1 = vector.multi_reduction <add>, %0, %cst [1] : vector<8x16x16xf32> to vector<8x16xf32>
    %2 = vector.shape_cast %1 : vector<8x16xf32> to vector<8x1x16xf32>
    %cst_2 = arith.constant 1.600000e+01 : f32
    %3 = vector.broadcast %cst_2 : f32 to vector<8x1x16xf32>
    %4 = arith.divf %2, %3 : vector<8x1x16xf32>
    %5 = vector.broadcast %4 : vector<8x1x16xf32> to vector<8x16x16xf32>
    %6 = arith.subf %0, %5 : vector<8x16x16xf32>
    %7 = arith.mulf %6, %6 : vector<8x16x16xf32>
    %cst_3 = arith.constant dense<0.000000e+00> : vector<8x16xf32>
    %8 = vector.multi_reduction <add>, %7, %cst_3 [1] : vector<8x16x16xf32> to vector<8x16xf32>
    %9 = vector.shape_cast %8 : vector<8x16xf32> to vector<8x1x16xf32>
    %cst_4 = arith.constant 1.600000e+01 : f32
    %10 = vector.broadcast %cst_4 : f32 to vector<8x1x16xf32>
    %11 = arith.divf %9, %10 : vector<8x1x16xf32>
    %cst_5 = arith.constant 9.99999974E-6 : f32
    %12 = vector.broadcast %cst_5 : f32 to vector<8x1x16xf32>
    %13 = arith.addf %11, %12 : vector<8x1x16xf32>
    %14 = math.rsqrt %13 : vector<8x1x16xf32>
    %15 = vector.broadcast %14 : vector<8x1x16xf32> to vector<8x16x16xf32>
    %16 = arith.mulf %6, %15 : vector<8x16x16xf32>
    %c0_6 = arith.constant 0 : index
    %c0_7 = arith.constant 0 : index
    %c0_8 = arith.constant 0 : index
    %17 = vector.load %arg3[%c0_6, %c0_7, %c0_8] : memref<1x16x1xf32, #tpu.memory_space<vmem>>, vector<1x16x1xf32>
    %18 = vector.broadcast %17 : vector<1x16x1xf32> to vector<8x16x16xf32>
    %19 = arith.mulf %16, %18 : vector<8x16x16xf32>
    %c0_9 = arith.constant 0 : index
    %c0_10 = arith.constant 0 : index
    %c0_11 = arith.constant 0 : index
    %20 = vector.load %arg4[%c0_9, %c0_10, %c0_11] : memref<1x16x1xf32, #tpu.memory_space<vmem>>, vector<1x16x1xf32>
    %21 = vector.broadcast %20 : vector<1x16x1xf32> to vector<8x16x16xf32>
    %22 = arith.addf %19, %21 : vector<8x16x16xf32>
    %c0_12 = arith.constant 0 : index
    %c0_13 = arith.constant 0 : index
    %c0_14 = arith.constant 0 : index
    %23 = vector.load %arg5[%c0_12, %c0_13, %c0_14] : memref<8x16x16xf32, #tpu.memory_space<vmem>>, vector<8x16x16xf32>
    tpu.vector_store %arg5[%c0_12, %c0_13, %c0_14], %22 {strides = array<i32>} : memref<8x16x16xf32, #tpu.memory_space<vmem>>, vector<8x16x16xf32>,
    return
  }
  func.func @transform_0(%arg0: i32, %arg1: i32) -> (i32, i32, i32) {
    %c0_i32 = arith.constant 0 : i32
    %c0_i32_0 = arith.constant 0 : i32
    return %arg0, %c0_i32, %arg1 : i32, i32, i32
  }
  func.func @transform_1(%arg0: i32, %arg1: i32) -> (i32, i32, i32) {
    %c0_i32 = arith.constant 0 : i32
    %c0_i32_0 = arith.constant 0 : i32
    %c0_i32_1 = arith.constant 0 : i32
    %c0_i32_2 = arith.constant 0 : i32
    return %c0_i32, %c0_i32_0, %c0_i32_1 : i32, i32, i32
  }
  func.func @transform_2(%arg0: i32, %arg1: i32) -> (i32, i32, i32) {
    %c0_i32 = arith.constant 0 : i32
    %c0_i32_0 = arith.constant 0 : i32
    %c0_i32_1 = arith.constant 0 : i32
    %c0_i32_2 = arith.constant 0 : i32
    return %c0_i32, %c0_i32_0, %c0_i32_1 : i32, i32, i32
  }
  func.func @transform_3(%arg0: i32, %arg1: i32) -> (i32, i32, i32) {
    %c0_i32 = arith.constant 0 : i32
    %c0_i32_0 = arith.constant 0 : i32
    return %arg0, %c0_i32, %arg1 : i32, i32, i32
  }
}

</mosaic_0001>

<llo_original>
// kernel: tpu_custom_call.1
$region0: #{tpu_custom_call.1}
  #allocation0 [shape = 'u32[]', space=smem, size = 0x4, offset = 0x4, fixed_abs, tag = 'smem constant byte address 0x4 - core index']
  #allocation1 [shape = 'u32[72,128]{1,0:T(1,128)}', space=vmem, size = 0x9000, scoped, tag = 'internal scratch']
  %s0 = inlined_call_operand.hbm [shape: f32[8,16,16], index: 0, kind: input, shape index: {}]
  %s1 = inlined_call_operand.vmem [shape: f32[1,16,1], index: 1, kind: input, shape index: {}]
  %s2 = inlined_call_operand.vmem [shape: f32[1,16,1], index: 2, kind: input, shape index: {}]
  %s3 = inlined_call_operand.hbm [shape: f32[8,16,16], index: 3, kind: output, shape index: {}]
  %s4 = sld [smem:[#allocation0]]
  $region26: #{tpu_custom_call.1} parent=0
    _
  %s6 = ssub.s32 1, %s4
  %s7 = scalar_select 0, %s6, %s4
  $region1: #{tpu_custom_call.1} parent=0
    #allocation2 [shape = 'u8[65536]{0}', space=vmem, size = 0x10000, scoped, tag = 'input window, operand 0, single buffered']
    #allocation3 [shape = 's32[1]{0}', space=sflag, size = 0x4, scoped, tag = 'scoped memory for tpu_custom_call.1']
    #allocation4 [shape = 's32[1]{0}', space=sflag, size = 0x4, scoped, tag = 'scoped memory for tpu_custom_call.1']
    #allocation5 [shape = 'u8[65536]{0}', space=vmem, size = 0x10000, scoped, tag = 'output window, operand 0, single buffered']
    %8 = vsyncpa [#allocation3], 0
    %9 = vsyncpa [#allocation4], 0
    // Predicated region
    $region2: #{tpu_custom_call.1} parent=1 // pred_check
      _
    $region3: #{tpu_custom_call.1} parent=1 // pred_check_branch
      %11 = sbr.rel (0) target = $region5
    $region4: #{tpu_custom_call.1} parent=1 // pred_region
      %13 = vsyncadd [#allocation3], 0
      %s14 = sshll.u32 %s0, 4
      %s15 = int_to_ptr.hbm [resolvable:$true] %s14
      %s16 = sshll.u32 [#allocation2], 4
      %s17 = int_to_ptr.vmem [resolvable:$true] %s16
      %22 = dma.hbm_to_vmem [thread:$0]  %s15, 2048, %s17, [#allocation3], 128, 128, 8
    $region5: #{tpu_custom_call.1} parent=1 // pred_fallthru
      _
    // Predicated region
    $region6: #{tpu_custom_call.1} parent=1 // pred_check
      _
    $region7: #{tpu_custom_call.1} parent=1 // pred_check_branch
      %24 = sbr.rel (0) target = $region9
    $region8: #{tpu_custom_call.1} parent=1 // pred_region
      _
    $region9: #{tpu_custom_call.1} parent=1 // pred_fallthru
      _
    // Predicated region
    $region10: #{tpu_custom_call.1} parent=1 // pred_check
      _
    $region11: #{tpu_custom_call.1} parent=1 // pred_check_branch
      %26 = sbr.rel (0) target = $region13
    $region12: #{tpu_custom_call.1} parent=1 // pred_region
      _
    $region13: #{tpu_custom_call.1} parent=1 // pred_fallthru
      _
    // Predicated region
    $region14: #{tpu_custom_call.1} parent=1 // pred_check
      _
    $region15: #{tpu_custom_call.1} parent=1 // pred_check_branch
      %28 = sbr.rel (0) target = $region17
    $region16: #{tpu_custom_call.1} parent=1 // pred_region
      %30 = dma.done [#allocation3], 2048
    $region17: #{tpu_custom_call.1} parent=1 // pred_fallthru
      _
    %v31 = vld [vmem:[#allocation2] sm:$0xff]
    %v32 = vld [vmem:[#allocation2 + $0x8] sm:$0xff]
    %v33 = vld [vmem:[#allocation2 + $0x10] sm:$0xff]
    %v34 = vld [vmem:[#allocation2 + $0x18] sm:$0xff]
    %v35 = vld [vmem:[#allocation2 + $0x20] sm:$0xff]
    %v36 = vld [vmem:[#allocation2 + $0x28] sm:$0xff]
    %v37 = vld [vmem:[#allocation2 + $0x30] sm:$0xff]
    %v38 = vld [vmem:[#allocation2 + $0x38] sm:$0xff]
    %v39 = vld [vmem:[#allocation2 + $0x40] sm:$0xff]
    %v40 = vld [vmem:[#allocation2 + $0x48] sm:$0xff]
    %v41 = vld [vmem:[#allocation2 + $0x50] sm:$0xff]
    %v42 = vld [vmem:[#allocation2 + $0x58] sm:$0xff]
    %v43 = vld [vmem:[#allocation2 + $0x60] sm:$0xff]
    %v44 = vld [vmem:[#allocation2 + $0x68] sm:$0xff]
    %v45 = vld [vmem:[#allocation2 + $0x70] sm:$0xff]
    %v46 = vld [vmem:[#allocation2 + $0x78] sm:$0xff]
    %vm47 = vcmask 130048
    %v48 = vsel %vm47, %v31, 0.0
    %v49 = vsel %vm47, %v32, 0.0
    %v50 = vadd.f32 %v48, %v49
    %v51 = vrot.slane %v50, 4
    %v52 = vadd.f32 %v50, %v51
    %v53 = vrot.slane %v52, 2
    %v54 = vadd.f32 %v52, %v53
    %v55 = vrot.slane %v54, 1
    %v56 = vadd.f32 %v54, %v55
    %v57 = vsel %vm47, %v33, 0.0
    %v58 = vsel %vm47, %v34, 0.0
    %v59 = vadd.f32 %v57, %v58
    %v60 = vrot.slane %v59, 4
    %v61 = vadd.f32 %v59, %v60
    %v62 = vrot.slane %v61, 2
    %v63 = vadd.f32 %v61, %v62
    %v64 = vrot.slane %v63, 1
    %v65 = vadd.f32 %v63, %v64
    %v66 = vsel %vm47, %v35, 0.0
    %v67 = vsel %vm47, %v36, 0.0
    %v68 = vadd.f32 %v66, %v67
    %v69 = vrot.slane %v68, 4
    %v70 = vadd.f32 %v68, %v69
    %v71 = vrot.slane %v70, 2
    %v72 = vadd.f32 %v70, %v71
    %v73 = vrot.slane %v72, 1
    %v74 = vadd.f32 %v72, %v73
    %v75 = vsel %vm47, %v37, 0.0
    %v76 = vsel %vm47, %v38, 0.0
    %v77 = vadd.f32 %v75, %v76
    %v78 = vrot.slane %v77, 4
    %v79 = vadd.f32 %v77, %v78
    %v80 = vrot.slane %v79, 2
    %v81 = vadd.f32 %v79, %v80
    %v82 = vrot.slane %v81, 1
    %v83 = vadd.f32 %v81, %v82
    %v84 = vsel %vm47, %v39, 0.0
    %v85 = vsel %vm47, %v40, 0.0
    %v86 = vadd.f32 %v84, %v85
    %v87 = vrot.slane %v86, 4
    %v88 = vadd.f32 %v86, %v87
    %v89 = vrot.slane %v88, 2
    %v90 = vadd.f32 %v88, %v89
    %v91 = vrot.slane %v90, 1
    %v92 = vadd.f32 %v90, %v91
    %v93 = vsel %vm47, %v41, 0.0
    %v94 = vsel %vm47, %v42, 0.0
    %v95 = vadd.f32 %v93, %v94
    %v96 = vrot.slane %v95, 4
    %v97 = vadd.f32 %v95, %v96
    %v98 = vrot.slane %v97, 2
    %v99 = vadd.f32 %v97, %v98
    %v100 = vrot.slane %v99, 1
    %v101 = vadd.f32 %v99, %v100
    %v102 = vsel %vm47, %v43, 0.0
    %v103 = vsel %vm47, %v44, 0.0
    %v104 = vadd.f32 %v102, %v103
    %v105 = vrot.slane %v104, 4
    %v106 = vadd.f32 %v104, %v105
    %v107 = vrot.slane %v106, 2
    %v108 = vadd.f32 %v106, %v107
    %v109 = vrot.slane %v108, 1
    %v110 = vadd.f32 %v108, %v109
    %v111 = vsel %vm47, %v45, 0.0
    %v112 = vsel %vm47, %v46, 0.0
    %v113 = vadd.f32 %v111, %v112
    %v114 = vrot.slane %v113, 4
    %v115 = vadd.f32 %v113, %v114
    %v116 = vrot.slane %v115, 2
    %v117 = vadd.f32 %v115, %v116
    %v118 = vrot.slane %v117, 1
    %v119 = vadd.f32 %v117, %v118
    %v120 = vrcp.pop 16.0
    %v121 = vmul.f32 16.0, %v120
    %v122 = vsub.f32 1.0, %v121
    %v123 = vmul.f32 %v120, %v122
    %v124 = vadd.f32 %v120, %v123
    %vm125 = vweird.f32 %v120
    %v126 = vsel %vm125, %v120, %v124
    %v127 = vmul.f32 %v56, %v126
    %v128 = vmul.f32 %v65, %v126
    %v129 = vmul.f32 %v74, %v126
    %v130 = vmul.f32 %v83, %v126
    %v131 = vmul.f32 %v92, %v126
    %v132 = vmul.f32 %v101, %v126
    %v133 = vmul.f32 %v110, %v126
    %v134 = vmul.f32 %v119, %v126
    %v135 = vsub.f32 %v31, %v127
    %v136 = vsub.f32 %v32, %v127
    %v137 = vsub.f32 %v33, %v128
    %v138 = vsub.f32 %v34, %v128
    %v139 = vsub.f32 %v35, %v129
    %v140 = vsub.f32 %v36, %v129
    %v141 = vsub.f32 %v37, %v130
    %v142 = vsub.f32 %v38, %v130
    %v143 = vsub.f32 %v39, %v131
    %v144 = vsub.f32 %v40, %v131
    %v145 = vsub.f32 %v41, %v132
    %v146 = vsub.f32 %v42, %v132
    %v147 = vsub.f32 %v43, %v133
    %v148 = vsub.f32 %v44, %v133
    %v149 = vsub.f32 %v45, %v134
    %v150 = vsub.f32 %v46, %v134
    %v151 = vmul.f32 %v135, %v135
    %v152 = vmul.f32 %v136, %v136
    %v153 = vmul.f32 %v137, %v137
    %v154 = vmul.f32 %v138, %v138
    %v155 = vmul.f32 %v139, %v139
    %v156 = vmul.f32 %v140, %v140
    %v157 = vmul.f32 %v141, %v141
    %v158 = vmul.f32 %v142, %v142
    %v159 = vmul.f32 %v143, %v143
    %v160 = vmul.f32 %v144, %v144
    %v161 = vmul.f32 %v145, %v145
    %v162 = vmul.f32 %v146, %v146
    %v163 = vmul.f32 %v147, %v147
    %v164 = vmul.f32 %v148, %v148
    %v165 = vmul.f32 %v149, %v149
    %v166 = vmul.f32 %v150, %v150
    %v167 = vsel %vm47, %v151, 0.0
    %v168 = vsel %vm47, %v152, 0.0
    %v169 = vadd.f32 %v167, %v168
    %v170 = vrot.slane %v169, 4
    %v171 = vadd.f32 %v169, %v170
    %v172 = vrot.slane %v171, 2
    %v173 = vadd.f32 %v171, %v172
    %v174 = vrot.slane %v173, 1
    %v175 = vadd.f32 %v173, %v174
    %v176 = vsel %vm47, %v153, 0.0
    %v177 = vsel %vm47, %v154, 0.0
    %v178 = vadd.f32 %v176, %v177
    %v179 = vrot.slane %v178, 4
    %v180 = vadd.f32 %v178, %v179
    %v181 = vrot.slane %v180, 2
    %v182 = vadd.f32 %v180, %v181
    %v183 = vrot.slane %v182, 1
    %v184 = vadd.f32 %v182, %v183
    %v185 = vsel %vm47, %v155, 0.0
    %v186 = vsel %vm47, %v156, 0.0
    %v187 = vadd.f32 %v185, %v186
    %v188 = vrot.slane %v187, 4
    %v189 = vadd.f32 %v187, %v188
    %v190 = vrot.slane %v189, 2
    %v191 = vadd.f32 %v189, %v190
    %v192 = vrot.slane %v191, 1
    %v193 = vadd.f32 %v191, %v192
    %v194 = vsel %vm47, %v157, 0.0
    %v195 = vsel %vm47, %v158, 0.0
    %v196 = vadd.f32 %v194, %v195
    %v197 = vrot.slane %v196, 4
    %v198 = vadd.f32 %v196, %v197
    %v199 = vrot.slane %v198, 2
    %v200 = vadd.f32 %v198, %v199
    %v201 = vrot.slane %v200, 1
    %v202 = vadd.f32 %v200, %v201
    %v203 = vsel %vm47, %v159, 0.0
    %v204 = vsel %vm47, %v160, 0.0
    %v205 = vadd.f32 %v203, %v204
    %v206 = vrot.slane %v205, 4
    %v207 = vadd.f32 %v205, %v206
    %v208 = vrot.slane %v207, 2
    %v209 = vadd.f32 %v207, %v208
    %v210 = vrot.slane %v209, 1
    %v211 = vadd.f32 %v209, %v210
    %v212 = vsel %vm47, %v161, 0.0
    %v213 = vsel %vm47, %v162, 0.0
    %v214 = vadd.f32 %v212, %v213
    %v215 = vrot.slane %v214, 4
    %v216 = vadd.f32 %v214, %v215
    %v217 = vrot.slane %v216, 2
    %v218 = vadd.f32 %v216, %v217
    %v219 = vrot.slane %v218, 1
    %v220 = vadd.f32 %v218, %v219
    %v221 = vsel %vm47, %v163, 0.0
    %v222 = vsel %vm47, %v164, 0.0
    %v223 = vadd.f32 %v221, %v222
    %v224 = vrot.slane %v223, 4
    %v225 = vadd.f32 %v223, %v224
    %v226 = vrot.slane %v225, 2
    %v227 = vadd.f32 %v225, %v226
    %v228 = vrot.slane %v227, 1
    %v229 = vadd.f32 %v227, %v228
    %v230 = vsel %vm47, %v165, 0.0
    %v231 = vsel %vm47, %v166, 0.0
    %v232 = vadd.f32 %v230, %v231
    %v233 = vrot.slane %v232, 4
    %v234 = vadd.f32 %v232, %v233
    %v235 = vrot.slane %v234, 2
    %v236 = vadd.f32 %v234, %v235
    %v237 = vrot.slane %v236, 1
    %v238 = vadd.f32 %v236, %v237
    %v239 = vmul.f32 %v175, %v126
    %v240 = vmul.f32 %v184, %v126
    %v241 = vmul.f32 %v193, %v126
    %v242 = vmul.f32 %v202, %v126
    %v243 = vmul.f32 %v211, %v126
    %v244 = vmul.f32 %v220, %v126
    %v245 = vmul.f32 %v229, %v126
    %v246 = vmul.f32 %v238, %v126
    %v247 = vadd.f32 %v239, 1e-05
    %v248 = vadd.f32 %v240, 1e-05
    %v249 = vadd.f32 %v241, 1e-05
    %v250 = vadd.f32 %v242, 1e-05
    %v251 = vadd.f32 %v243, 1e-05
    %v252 = vadd.f32 %v244, 1e-05
    %v253 = vadd.f32 %v245, 1e-05
    %v254 = vadd.f32 %v246, 1e-05
    %v255 = vrsqrt.pop %v247
    %v256 = vmul.f32 %v255, %v247
    %v257 = vmul.f32 %v256, %v255
    %v258 = vmul.f32 0.5, %v257
    %v259 = vsub.f32 1.5, %v258
    %v260 = vmul.f32 %v255, %v259
    %vm261 = vweird.f32 %v247
    %vm262 = vweird.f32 %v255
    %vm263 = vmor %vm261, %vm262
    %v264 = vsel %vm263, %v255, %v260
    %v265 = vrsqrt.pop %v248
    %v266 = vmul.f32 %v265, %v248
    %v267 = vmul.f32 %v266, %v265
    %v268 = vmul.f32 0.5, %v267
    %v269 = vsub.f32 1.5, %v268
    %v270 = vmul.f32 %v265, %v269
    %vm271 = vweird.f32 %v248
    %vm272 = vweird.f32 %v265
    %vm273 = vmor %vm271, %vm272
    %v274 = vsel %vm273, %v265, %v270
    %v275 = vrsqrt.pop %v249
    %v276 = vmul.f32 %v275, %v249
    %v277 = vmul.f32 %v276, %v275
    %v278 = vmul.f32 0.5, %v277
    %v279 = vsub.f32 1.5, %v278
    %v280 = vmul.f32 %v275, %v279
    %vm281 = vweird.f32 %v249
    %vm282 = vweird.f32 %v275
    %vm283 = vmor %vm281, %vm282
    %v284 = vsel %vm283, %v275, %v280
    %v285 = vrsqrt.pop %v250
    %v286 = vmul.f32 %v285, %v250
    %v287 = vmul.f32 %v286, %v285
    %v288 = vmul.f32 0.5, %v287
    %v289 = vsub.f32 1.5, %v288
    %v290 = vmul.f32 %v285, %v289
    %vm291 = vweird.f32 %v250
    %vm292 = vweird.f32 %v285
    %vm293 = vmor %vm291, %vm292
    %v294 = vsel %vm293, %v285, %v290
    %v295 = vrsqrt.pop %v251
    %v296 = vmul.f32 %v295, %v251
    %v297 = vmul.f32 %v296, %v295
    %v298 = vmul.f32 0.5, %v297
    %v299 = vsub.f32 1.5, %v298
    %v300 = vmul.f32 %v295, %v299
    %vm301 = vweird.f32 %v251
    %vm302 = vweird.f32 %v295
    %vm303 = vmor %vm301, %vm302
    %v304 = vsel %vm303, %v295, %v300
    %v305 = vrsqrt.pop %v252
    %v306 = vmul.f32 %v305, %v252
    %v307 = vmul.f32 %v306, %v305
    %v308 = vmul.f32 0.5, %v307
    %v309 = vsub.f32 1.5, %v308
    %v310 = vmul.f32 %v305, %v309
    %vm311 = vweird.f32 %v252
    %vm312 = vweird.f32 %v305
    %vm313 = vmor %vm311, %vm312
    %v314 = vsel %vm313, %v305, %v310
    %v315 = vrsqrt.pop %v253
    %v316 = vmul.f32 %v315, %v253
    %v317 = vmul.f32 %v316, %v315
    %v318 = vmul.f32 0.5, %v317
    %v319 = vsub.f32 1.5, %v318
    %v320 = vmul.f32 %v315, %v319
    %vm321 = vweird.f32 %v253
    %vm322 = vweird.f32 %v315
    %vm323 = vmor %vm321, %vm322
    %v324 = vsel %vm323, %v315, %v320
    %v325 = vrsqrt.pop %v254
    %v326 = vmul.f32 %v325, %v254
    %v327 = vmul.f32 %v326, %v325
    %v328 = vmul.f32 0.5, %v327
    %v329 = vsub.f32 1.5, %v328
    %v330 = vmul.f32 %v325, %v329
    %vm331 = vweird.f32 %v254
    %vm332 = vweird.f32 %v325
    %vm333 = vmor %vm331, %vm332
    %v334 = vsel %vm333, %v325, %v330
    %v335 = vmul.f32 %v135, %v264
    %v336 = vmul.f32 %v136, %v264
    %v337 = vmul.f32 %v137, %v274
    %v338 = vmul.f32 %v138, %v274
    %v339 = vmul.f32 %v139, %v284
    %v340 = vmul.f32 %v140, %v284
    %v341 = vmul.f32 %v141, %v294
    %v342 = vmul.f32 %v142, %v294
    %v343 = vmul.f32 %v143, %v304
    %v344 = vmul.f32 %v144, %v304
    %v345 = vmul.f32 %v145, %v314
    %v346 = vmul.f32 %v146, %v314
    %v347 = vmul.f32 %v147, %v324
    %v348 = vmul.f32 %v148, %v324
    %v349 = vmul.f32 %v149, %v334
    %v350 = vmul.f32 %v150, %v334
    %v351 = vld [vmem:[%s1] sm:$0xff]
    %v352 = vld [vmem:[%s1 + $0x8] sm:$0xff]
    %354 = vset.pattern.permute.xlu0 0
    %355 = vperm.xlu0 %354, %v351
    %v356 = vpop.permute.xlu0 %355
    %359 = vset.pattern.permute.xlu0 0
    %360 = vperm.xlu0 %359, %v352
    %v361 = vpop.permute.xlu0 %360
    %v363 = vmul.f32 %v335, %v356
    %v364 = vmul.f32 %v336, %v361
    %v365 = vmul.f32 %v337, %v356
    %v366 = vmul.f32 %v338, %v361
    %v367 = vmul.f32 %v339, %v356
    %v368 = vmul.f32 %v340, %v361
    %v369 = vmul.f32 %v341, %v356
    %v370 = vmul.f32 %v342, %v361
    %v371 = vmul.f32 %v343, %v356
    %v372 = vmul.f32 %v344, %v361
    %v373 = vmul.f32 %v345, %v356
    %v374 = vmul.f32 %v346, %v361
    %v375 = vmul.f32 %v347, %v356
    %v376 = vmul.f32 %v348, %v361
    %v377 = vmul.f32 %v349, %v356
    %v378 = vmul.f32 %v350, %v361
    %v379 = vld [vmem:[%s2] sm:$0xff]
    %v380 = vld [vmem:[%s2 + $0x8] sm:$0xff]
    %382 = vset.pattern.permute.xlu0 0
    %383 = vperm.xlu0 %382, %v379
    %v384 = vpop.permute.xlu0 %383
    %387 = vset.pattern.permute.xlu0 0
    %388 = vperm.xlu0 %387, %v380
    %v389 = vpop.permute.xlu0 %388
    %v391 = vadd.f32 %v363, %v384
    %v392 = vadd.f32 %v364, %v389
    %v393 = vadd.f32 %v365, %v384
    %v394 = vadd.f32 %v366, %v389
    %v395 = vadd.f32 %v367, %v384
    %v396 = vadd.f32 %v368, %v389
    %v397 = vadd.f32 %v369, %v384
    %v398 = vadd.f32 %v370, %v389
    %v399 = vadd.f32 %v371, %v384
    %v400 = vadd.f32 %v372, %v389
    %v401 = vadd.f32 %v373, %v384
    %v402 = vadd.f32 %v374, %v389
    %v403 = vadd.f32 %v375, %v384
    %v404 = vadd.f32 %v376, %v389
    %v405 = vadd.f32 %v377, %v384
    %v406 = vadd.f32 %v378, %v389
    %407 = vst.msk [vmem:[#allocation5] sm:$0xff] %vm47, %v391
    %408 = vst.msk [vmem:[#allocation5 + $0x8] sm:$0xff] %vm47, %v392
    %409 = vst.msk [vmem:[#allocation5 + $0x10] sm:$0xff] %vm47, %v393
    %410 = vst.msk [vmem:[#allocation5 + $0x18] sm:$0xff] %vm47, %v394
    %411 = vst.msk [vmem:[#allocation5 + $0x20] sm:$0xff] %vm47, %v395
    %412 = vst.msk [vmem:[#allocation5 + $0x28] sm:$0xff] %vm47, %v396
    %413 = vst.msk [vmem:[#allocation5 + $0x30] sm:$0xff] %vm47, %v397
    %414 = vst.msk [vmem:[#allocation5 + $0x38] sm:$0xff] %vm47, %v398
    %415 = vst.msk [vmem:[#allocation5 + $0x40] sm:$0xff] %vm47, %v399
    %416 = vst.msk [vmem:[#allocation5 + $0x48] sm:$0xff] %vm47, %v400
    %417 = vst.msk [vmem:[#allocation5 + $0x50] sm:$0xff] %vm47, %v401
    %418 = vst.msk [vmem:[#allocation5 + $0x58] sm:$0xff] %vm47, %v402
    %419 = vst.msk [vmem:[#allocation5 + $0x60] sm:$0xff] %vm47, %v403
    %420 = vst.msk [vmem:[#allocation5 + $0x68] sm:$0xff] %vm47, %v404
    %421 = vst.msk [vmem:[#allocation5 + $0x70] sm:$0xff] %vm47, %v405
    %422 = vst.msk [vmem:[#allocation5 + $0x78] sm:$0xff] %vm47, %v406
    // Predicated region
    $region18: #{tpu_custom_call.1} parent=1 // pred_check
      _
    $region19: #{tpu_custom_call.1} parent=1 // pred_check_branch
      %424 = sbr.rel (0) target = $region21
    $region20: #{tpu_custom_call.1} parent=1 // pred_region
      %426 = vsyncadd [#allocation4], 0
      %s427 = sshll.u32 [#allocation5], 4
      %s428 = int_to_ptr.vmem [resolvable:$true] %s427
      %s429 = sshll.u32 %s3, 4
      %s430 = int_to_ptr.hbm [resolvable:$true] %s429
      %435 = dma.vmem_to_hbm [thread:$0]  %s428, 2048, %s430, [#allocation4], 128, 128, 8
    $region21: #{tpu_custom_call.1} parent=1 // pred_fallthru
      _
    // Predicated region
    $region22: #{tpu_custom_call.1} parent=1 // pred_check
      _
    $region23: #{tpu_custom_call.1} parent=1 // pred_check_branch
      %437 = sbr.rel (0) target = $region25
    $region24: #{tpu_custom_call.1} parent=1 // pred_region
      %439 = dma.done [#allocation4], 2048
    $region25: #{tpu_custom_call.1} parent=1 // pred_fallthru
      _
    %440 = vsyncpa [#allocation3], 1
    %441 = vsyncpa [#allocation4], 1

</llo_original>
